<compile_context>
chip_gen: v7x
topology: tpu7x:2x2x1
jax: 0.10.0
libtpu: 0.0.40
codegen_flags: <defaults>
</compile_context>

<pallas_src>
import functools

import jax
import jax.numpy as jnp
from jax.experimental import pallas as pl
from jax.experimental.pallas import tpu as pltpu


def _round_up(x, m):
    return ((x + m - 1) // m) * m


def _cdiv(a, b):
    return -(-a // b)


def _mlp_kernel(*refs, n_chunks):
    """refs = (x_ref, w0, b0, ..., w_hidden_k, b_hidden_k, w_lastT, b_last, o_ref).

    w_lastT is the final (hidden, 1) weight pre-transposed to (1, hidden) by the wrapper.
    o_ref block is (1, 1, tile): lane-dense, one output scalar per lane.
    """
    x_ref = refs[0]
    o_ref = refs[-1]
    prm = refs[1:-1]
    n_hidden = len(prm) // 2 - 1          # layers followed by SiLU
    tile = x_ref.shape[0]
    rows = tile // n_chunks
    compute_dtype = x_ref.dtype           # bf16 stays bf16 on the MXU; f32 stays f32

    w_last = prm[-2][...]                           # (1, hidden)
    b_last = prm[-1][...].astype(jnp.float32)       # (1, 1)

    # Independent batch sub-chunks: the layer chain of chunk c+1 can overlap the
    # SiLU / final-reduce of chunk c in the VLIW schedule (MXU vs VPU/EUP slots).
    for c in range(n_chunks):
        if n_chunks == 1:
            h = x_ref[...]
        else:
            h = x_ref[pl.ds(c * rows, rows), :]
        for i in range(n_hidden):
            w = prm[2 * i][...]
            b = prm[2 * i + 1][...].astype(jnp.float32)
            # f32 accumulation regardless of input dtype.
            a = jnp.dot(h, w, preferred_element_type=jnp.float32) + b
            # SiLU(x) = x * sigmoid(x); sigmoid lands on the EUP slot.
            a = a * jax.nn.sigmoid(a)
            h = a.astype(compute_dtype)
        # Final Linear(hidden -> 1) as a trans-B matmul: (1,H) . (rows,H)^T -> (1, rows).
        # The MXU result is already lane-dense, no (rows,1)->(1,rows) relayout needed.
        y = jax.lax.dot_general(
            w_last, h,
            dimension_numbers=(((1,), (1,)), ((), ())),
            preferred_element_type=jnp.float32,
        ) + b_last                                   # (1, rows) f32
        o_ref[:, :, pl.ds(c * rows, rows)] = y[None].astype(o_ref.dtype)


def mlp_estimate_forward(x, params, *, batch_tile=512):
    """x: (B, input_size); params: list of (W, b) with W:(in,out), b:(1,out)."""
    B, D = x.shape
    itemsize = x.dtype.itemsize
    sublane = {4: 8, 2: 16, 1: 32}.get(itemsize, 8)

    # Large batch tile, rounded to the dtype sublane width; no host-side padding of x.
    tile = min(batch_tile, _round_up(B, sublane))
    tile = _round_up(tile, sublane)
    # v7x megacore: give the ("parallel",) batch axis >= 2 grid steps when the batch is
    # large enough to split without tiny tiles.
    if _cdiv(B, tile) < 2 and B >= 256:
        tile = _round_up(_cdiv(B, 2), sublane)
    num_tiles = _cdiv(B, tile)
    # In-kernel sub-chunking only when each chunk stays >= 128 rows and lane-aligned.
    n_chunks = 2 if (tile >= 256 and tile % 256 == 0) else 1

    # Flatten params; pre-transpose the last (hidden, 1) weight to (1, hidden) so the
    # final matmul emits the lane-dense row directly.
    flat_params = []
    for li, (w, b) in enumerate(params):
        if li == len(params) - 1:
            w = jnp.transpose(w)          # (hidden, 1) -> (1, hidden), tiny host-side op
        flat_params.extend([w, b])

    layer_dims = [(w.shape[0], w.shape[1]) for (w, _) in params]
    Bp = num_tiles * tile
    param_bytes = sum(int(p.size) * p.dtype.itemsize for p in flat_params)
    act_width = max(fo for _, fo in layer_dims)

    # Advisory cost estimate for XLA's scheduler (sigmoid ~ exp + reciprocal on EUP).
    cost = pl.CostEstimate(
        flops=int(2 * Bp * sum(fi * fo for fi, fo in layer_dims)),
        transcendentals=int(2 * Bp * sum(fo for _, fo in layer_dims[:-1])),
        bytes_accessed=int(B * D * itemsize + param_bytes + Bp * itemsize),
    )

    def _build(buffered_weights):
        in_specs = [pl.BlockSpec((tile, D), lambda i: (i, 0))]
        spec_kwargs = {"pipeline_mode": pl.Buffered(1)} if buffered_weights else {}
        for p in flat_params:
            # Constant block index -> params stay VMEM-resident; Buffered(1) drops the
            # pointless second buffer.
            in_specs.append(pl.BlockSpec(p.shape, lambda i: (0, 0), **spec_kwargs))
        out_specs = pl.BlockSpec((1, 1, tile), lambda i: (i, 0, 0))

        # Explicit VMEM budget: x tile (2 buffers) + params (1 or 2 buffers) + output
        # row (2 buffers) + f32 activation temporaries, with 2x headroom.
        wbuf = 1 if buffered_weights else 2
        budget = (2 * tile * D * itemsize
                  + 2 * tile * itemsize
                  + wbuf * param_bytes
                  + 3 * tile * act_width * 4)
        vmem_limit = int(min(max(2 * budget, 32 * 1024 * 1024), 64 * 1024 * 1024))

        return pl.pallas_call(
            functools.partial(_mlp_kernel, n_chunks=n_chunks),
            out_shape=jax.ShapeDtypeStruct((num_tiles, 1, tile), x.dtype),
            grid_spec=pl.GridSpec(
                grid=(num_tiles,),
                in_specs=in_specs,
                out_specs=out_specs,
            ),
            compiler_params=pltpu.CompilerParams(
                dimension_semantics=("parallel",),
                vmem_limit_bytes=vmem_limit,
            ),
            cost_estimate=cost,
        )

    out = None
    last_err = None
    for buffered in (True, False):
        try:
            out = _build(buffered)(x, *flat_params)
            break
        except Exception as e:  # e.g. this jax build rejecting pl.Buffered(1)
            last_err = e
    if out is None:
        raise last_err

    # (num_tiles, 1, tile) -> (B, 1); the sliced-off tail rows are the Pallas-padded
    # ragged-block garbage (tiny copy: B output scalars, not a second pass over x).
    return out.reshape(num_tiles * tile)[:B].reshape(B, 1)


def init_mlp_params(key, input_size, hidden_size, num_layers, dtype=jnp.float32):
    """Deterministic synthetic params matching MLPEstimate's layer shapes.

    Weights are stored as (in_features, out_features) (transpose of nn.Linear.weight),
    biases as (1, out_features), so each layer is h = h @ W + b.
    """
    dims = [input_size] + [hidden_size] * num_layers + [1]
    params = []
    for li in range(len(dims) - 1):
        key, kw, kb = jax.random.split(key, 3)
        fan_in, fan_out = dims[li], dims[li + 1]
        scale = 1.0 / float(fan_in) ** 0.5
        w = jax.random.uniform(kw, (fan_in, fan_out), dtype=dtype,
                               minval=-scale, maxval=scale)
        b = jax.random.uniform(kb, (1, fan_out), dtype=dtype,
                               minval=-scale, maxval=scale)
        params.append((w, b))
    return params


def mlp_reference(x, params):
    """Pure-JAX reference of the same forward pass."""
    h = x
    for i, (w, b) in enumerate(params):
        h = h @ w + b
        if i < len(params) - 1:
            h = h * jax.nn.sigmoid(h)
    return h


if __name__ == "__main__":
    key = jax.random.PRNGKey(0)
    input_size, hidden_size, num_layers = 16, 32, 3
    batch = 16

    kx, kp, kx2 = jax.random.split(key, 3)
    x = jax.random.normal(kx, (batch, input_size), dtype=jnp.float32)
    params = init_mlp_params(kp, input_size, hidden_size, num_layers)

    out = jax.block_until_ready(mlp_estimate_forward(x, params))
    ref = mlp_reference(x, params)
    assert out.shape == (batch, 1), out.shape
    assert jnp.allclose(out, ref, atol=1e-5, rtol=1e-5), (
        f"max abs err {jnp.max(jnp.abs(out - ref))}"
    )

    # Ragged batch (B % tile != 0) -> Pallas-padded last block, multi-step grid.
    x2 = jax.random.normal(kx2, (200, input_size), dtype=jnp.float32)
    out2 = jax.block_until_ready(mlp_estimate_forward(x2, params, batch_tile=64))
    ref2 = mlp_reference(x2, params)
    assert out2.shape == (200, 1), out2.shape
    assert jnp.allclose(out2, ref2, atol=1e-5, rtol=1e-5), (
        f"max abs err {jnp.max(jnp.abs(out2 - ref2))}"
    )

    # bf16 path (MXU-native on v6e/v7x, halves HBM/VMEM bytes on v5e); relaxed tolerance
    # vs. the f32 reference since inter-layer activations round-trip through bf16.
    params_bf16 = [(w.astype(jnp.bfloat16), b.astype(jnp.bfloat16)) for w, b in params]
    x_bf16 = x.astype(jnp.bfloat16)
    out3 = jax.block_until_ready(mlp_estimate_forward(x_bf16, params_bf16))
    assert out3.shape == (batch, 1), out3.shape
    assert jnp.allclose(out3.astype(jnp.float32), ref, atol=5e-2, rtol=5e-2), (
        f"max abs err {jnp.max(jnp.abs(out3.astype(jnp.float32) - ref))}"
    )

    print("KERNEL_OK")
</pallas_src>

<mosaic_0001>
module attributes {stable_mosaic.version = 11 : i64} {
  func.func @_mlp_kernel(%arg0: i32, %arg1: memref<16x16xf32, #tpu.memory_space<vmem>>, %arg2: memref<16x32xf32, #tpu.memory_space<vmem>>, %arg3: memref<1x32xf32, #tpu.memory_space<vmem>>, %arg4: memref<32x32xf32, #tpu.memory_space<vmem>>, %arg5: memref<1x32xf32, #tpu.memory_space<vmem>>, %arg6: memref<32x32xf32, #tpu.memory_space<vmem>>, %arg7: memref<1x32xf32, #tpu.memory_space<vmem>>, %arg8: memref<1x32xf32, #tpu.memory_space<vmem>>, %arg9: memref<1x1xf32, #tpu.memory_space<vmem>>, %arg10: memref<1x1x16xf32, #tpu.memory_space<vmem>>) attributes {dimension_semantics = [#tpu.dimension_semantics<parallel>], iteration_bounds = array<i64: 1>, scalar_prefetch = 0 : i64, scratch_operands = 0 : i64, tpu.core_type = #tpu.core_type<tc>, window_params = [{transform_indices = @transform_0, window_bounds = array<i64: 16, 16>}, {pipeline_mode = #tpu.pipeline_mode<synchronous>, transform_indices = @transform_1, window_bounds = array<i64: 16, 32>}, {pipeline_mode = #tpu.pipeline_mode<synchronous>, transform_indices = @transform_2, window_bounds = array<i64: 1, 32>}, {pipeline_mode = #tpu.pipeline_mode<synchronous>, transform_indices = @transform_3, window_bounds = array<i64: 32, 32>}, {pipeline_mode = #tpu.pipeline_mode<synchronous>, transform_indices = @transform_4, window_bounds = array<i64: 1, 32>}, {pipeline_mode = #tpu.pipeline_mode<synchronous>, transform_indices = @transform_5, window_bounds = array<i64: 32, 32>}, {pipeline_mode = #tpu.pipeline_mode<synchronous>, transform_indices = @transform_6, window_bounds = array<i64: 1, 32>}, {pipeline_mode = #tpu.pipeline_mode<synchronous>, transform_indices = @transform_7, window_bounds = array<i64: 1, 32>}, {pipeline_mode = #tpu.pipeline_mode<synchronous>, transform_indices = @transform_8, window_bounds = array<i64: 1, 1>}, {transform_indices = @transform_9, window_bounds = array<i64: 1, 1, 16>}]} {
    %c0 = arith.constant 0 : index
    %c0_0 = arith.constant 0 : index
    %0 = vector.load %arg8[%c0, %c0_0] : memref<1x32xf32, #tpu.memory_space<vmem>>, vector<1x32xf32>
    %c0_1 = arith.constant 0 : index
    %c0_2 = arith.constant 0 : index
    %1 = vector.load %arg9[%c0_1, %c0_2] : memref<1x1xf32, #tpu.memory_space<vmem>>, vector<1x1xf32>
    %c0_3 = arith.constant 0 : index
    %c0_4 = arith.constant 0 : index
    %2 = vector.load %arg1[%c0_3, %c0_4] : memref<16x16xf32, #tpu.memory_space<vmem>>, vector<16x16xf32>
    %c0_5 = arith.constant 0 : index
    %c0_6 = arith.constant 0 : index
    %3 = vector.load %arg2[%c0_5, %c0_6] : memref<16x32xf32, #tpu.memory_space<vmem>>, vector<16x32xf32>
    %c0_7 = arith.constant 0 : index
    %c0_8 = arith.constant 0 : index
    %4 = vector.load %arg3[%c0_7, %c0_8] : memref<1x32xf32, #tpu.memory_space<vmem>>, vector<1x32xf32>
    %cst = arith.constant dense<0.000000e+00> : vector<16x32xf32>
    %5 = tpu.matmul %2, %3, %cst {dimension_numbers = #tpu.dot_dimension_numbers<[1], [0], [0], [1], [0, 0, 1, 1], [], []>} : vector<16x16xf32>, vector<16x32xf32>, vector<16x32xf32> -> vector<16x32xf32>
    %6 = vector.broadcast %4 : vector<1x32xf32> to vector<16x32xf32>
    %7 = arith.addf %5, %6 : vector<16x32xf32>
    %8 = arith.negf %7 : vector<16x32xf32>
    %9 = math.exp %8 : vector<16x32xf32>
    %cst_9 = arith.constant 1.000000e+00 : f32
    %10 = vector.broadcast %cst_9 : f32 to vector<16x32xf32>
    %11 = arith.addf %10, %9 : vector<16x32xf32>
    %12 = arith.divf %10, %11 : vector<16x32xf32>
    %13 = arith.mulf %7, %12 : vector<16x32xf32>
    %c0_10 = arith.constant 0 : index
    %c0_11 = arith.constant 0 : index
    %14 = vector.load %arg4[%c0_10, %c0_11] : memref<32x32xf32, #tpu.memory_space<vmem>>, vector<32x32xf32>
    %c0_12 = arith.constant 0 : index
    %c0_13 = arith.constant 0 : index
    %15 = vector.load %arg5[%c0_12, %c0_13] : memref<1x32xf32, #tpu.memory_space<vmem>>, vector<1x32xf32>
    %cst_14 = arith.constant dense<0.000000e+00> : vector<16x32xf32>
    %16 = tpu.matmul %13, %14, %cst_14 {dimension_numbers = #tpu.dot_dimension_numbers<[1], [0], [0], [1], [0, 0, 1, 1], [], []>} : vector<16x32xf32>, vector<32x32xf32>, vector<16x32xf32> -> vector<16x32xf32>
    %17 = vector.broadcast %15 : vector<1x32xf32> to vector<16x32xf32>
    %18 = arith.addf %16, %17 : vector<16x32xf32>
    %19 = arith.negf %18 : vector<16x32xf32>
    %20 = math.exp %19 : vector<16x32xf32>
    %cst_15 = arith.constant 1.000000e+00 : f32
    %21 = vector.broadcast %cst_15 : f32 to vector<16x32xf32>
    %22 = arith.addf %21, %20 : vector<16x32xf32>
    %23 = arith.divf %21, %22 : vector<16x32xf32>
    %24 = arith.mulf %18, %23 : vector<16x32xf32>
    %c0_16 = arith.constant 0 : index
    %c0_17 = arith.constant 0 : index
    %25 = vector.load %arg6[%c0_16, %c0_17] : memref<32x32xf32, #tpu.memory_space<vmem>>, vector<32x32xf32>
    %c0_18 = arith.constant 0 : index
    %c0_19 = arith.constant 0 : index
    %26 = vector.load %arg7[%c0_18, %c0_19] : memref<1x32xf32, #tpu.memory_space<vmem>>, vector<1x32xf32>
    %cst_20 = arith.constant dense<0.000000e+00> : vector<16x32xf32>
    %27 = tpu.matmul %24, %25, %cst_20 {dimension_numbers = #tpu.dot_dimension_numbers<[1], [0], [0], [1], [0, 0, 1, 1], [], []>} : vector<16x32xf32>, vector<32x32xf32>, vector<16x32xf32> -> vector<16x32xf32>
    %28 = vector.broadcast %26 : vector<1x32xf32> to vector<16x32xf32>
    %29 = arith.addf %27, %28 : vector<16x32xf32>
    %30 = arith.negf %29 : vector<16x32xf32>
    %31 = math.exp %30 : vector<16x32xf32>
    %cst_21 = arith.constant 1.000000e+00 : f32
    %32 = vector.broadcast %cst_21 : f32 to vector<16x32xf32>
    %33 = arith.addf %32, %31 : vector<16x32xf32>
    %34 = arith.divf %32, %33 : vector<16x32xf32>
    %35 = arith.mulf %29, %34 : vector<16x32xf32>
    %cst_22 = arith.constant dense<0.000000e+00> : vector<1x16xf32>
    %36 = tpu.matmul %0, %35, %cst_22 {dimension_numbers = #tpu.dot_dimension_numbers<[1], [1], [0], [0], [0, 0, 1, 0], [], []>} : vector<1x32xf32>, vector<16x32xf32>, vector<1x16xf32> -> vector<1x16xf32>
    %37 = vector.broadcast %1 : vector<1x1xf32> to vector<1x16xf32>
    %38 = arith.addf %36, %37 : vector<1x16xf32>
    %39 = vector.shape_cast %38 : vector<1x16xf32> to vector<1x1x16xf32>
    %c0_23 = arith.constant 0 : index
    %c0_24 = arith.constant 0 : index
    %c0_25 = arith.constant 0 : index
    %40 = vector.load %arg10[%c0_23, %c0_24, %c0_25] : memref<1x1x16xf32, #tpu.memory_space<vmem>>, vector<1x1x16xf32>
    tpu.vector_store %arg10[%c0_23, %c0_24, %c0_25], %39 {strides = array<i32>} : memref<1x1x16xf32, #tpu.memory_space<vmem>>, vector<1x1x16xf32>,
    return
  }
  func.func @transform_0(%arg0: i32) -> (i32, i32) {
    %c0_i32 = arith.constant 0 : i32
    %c0_i32_0 = arith.constant 0 : i32
    return %arg0, %c0_i32 : i32, i32
  }
  func.func @transform_1(%arg0: i32) -> (i32, i32) {
    %c0_i32 = arith.constant 0 : i32
    %c0_i32_0 = arith.constant 0 : i32
    %c0_i32_1 = arith.constant 0 : i32
    return %c0_i32, %c0_i32_0 : i32, i32
  }
  func.func @transform_2(%arg0: i32) -> (i32, i32) {
    %c0_i32 = arith.constant 0 : i32
    %c0_i32_0 = arith.constant 0 : i32
    %c0_i32_1 = arith.constant 0 : i32
    return %c0_i32, %c0_i32_0 : i32, i32
  }
  func.func @transform_3(%arg0: i32) -> (i32, i32) {
    %c0_i32 = arith.constant 0 : i32
    %c0_i32_0 = arith.constant 0 : i32
    %c0_i32_1 = arith.constant 0 : i32
    return %c0_i32, %c0_i32_0 : i32, i32
  }
  func.func @transform_4(%arg0: i32) -> (i32, i32) {
    %c0_i32 = arith.constant 0 : i32
    %c0_i32_0 = arith.constant 0 : i32
    %c0_i32_1 = arith.constant 0 : i32
    return %c0_i32, %c0_i32_0 : i32, i32
  }
  func.func @transform_5(%arg0: i32) -> (i32, i32) {
    %c0_i32 = arith.constant 0 : i32
    %c0_i32_0 = arith.constant 0 : i32
    %c0_i32_1 = arith.constant 0 : i32
    return %c0_i32, %c0_i32_0 : i32, i32
  }
  func.func @transform_6(%arg0: i32) -> (i32, i32) {
    %c0_i32 = arith.constant 0 : i32
    %c0_i32_0 = arith.constant 0 : i32
    %c0_i32_1 = arith.constant 0 : i32
    return %c0_i32, %c0_i32_0 : i32, i32
  }
  func.func @transform_7(%arg0: i32) -> (i32, i32) {
    %c0_i32 = arith.constant 0 : i32
    %c0_i32_0 = arith.constant 0 : i32
    %c0_i32_1 = arith.constant 0 : i32
    return %c0_i32, %c0_i32_0 : i32, i32
  }
  func.func @transform_8(%arg0: i32) -> (i32, i32) {
    %c0_i32 = arith.constant 0 : i32
    %c0_i32_0 = arith.constant 0 : i32
    %c0_i32_1 = arith.constant 0 : i32
    return %c0_i32, %c0_i32_0 : i32, i32
  }
  func.func @transform_9(%arg0: i32) -> (i32, i32, i32) {
    %c0_i32 = arith.constant 0 : i32
    %c0_i32_0 = arith.constant 0 : i32
    %c0_i32_1 = arith.constant 0 : i32
    return %arg0, %c0_i32, %c0_i32_0 : i32, i32, i32
  }
}

module attributes {stable_mosaic.version = 11 : i64} {
  func.func @_mlp_kernel(%arg0: i32, %arg1: memref<16x16xf32, #tpu.memory_space<vmem>>, %arg2: memref<16x32xf32, #tpu.memory_space<vmem>>, %arg3: memref<1x32xf32, #tpu.memory_space<vmem>>, %arg4: memref<32x32xf32, #tpu.memory_space<vmem>>, %arg5: memref<1x32xf32, #tpu.memory_space<vmem>>, %arg6: memref<32x32xf32, #tpu.memory_space<vmem>>, %arg7: memref<1x32xf32, #tpu.memory_space<vmem>>, %arg8: memref<1x32xf32, #tpu.memory_space<vmem>>, %arg9: memref<1x1xf32, #tpu.memory_space<vmem>>, %arg10: memref<1x1x16xf32, #tpu.memory_space<vmem>>) attributes {dimension_semantics = [#tpu.dimension_semantics<parallel>], iteration_bounds = array<i64: 1>, scalar_prefetch = 0 : i64, scratch_operands = 0 : i64, tpu.core_type = #tpu.core_type<tc>, window_params = [{transform_indices = @transform_0, window_bounds = array<i64: 16, 16>}, {pipeline_mode = #tpu.pipeline_mode<synchronous>, transform_indices = @transform_1, window_bounds = array<i64: 16, 32>}, {pipeline_mode = #tpu.pipeline_mode<synchronous>, transform_indices = @transform_2, window_bounds = array<i64: 1, 32>}, {pipeline_mode = #tpu.pipeline_mode<synchronous>, transform_indices = @transform_3, window_bounds = array<i64: 32, 32>}, {pipeline_mode = #tpu.pipeline_mode<synchronous>, transform_indices = @transform_4, window_bounds = array<i64: 1, 32>}, {pipeline_mode = #tpu.pipeline_mode<synchronous>, transform_indices = @transform_5, window_bounds = array<i64: 32, 32>}, {pipeline_mode = #tpu.pipeline_mode<synchronous>, transform_indices = @transform_6, window_bounds = array<i64: 1, 32>}, {pipeline_mode = #tpu.pipeline_mode<synchronous>, transform_indices = @transform_7, window_bounds = array<i64: 1, 32>}, {pipeline_mode = #tpu.pipeline_mode<synchronous>, transform_indices = @transform_8, window_bounds = array<i64: 1, 1>}, {transform_indices = @transform_9, window_bounds = array<i64: 1, 1, 16>}]} {
    %c0 = arith.constant 0 : index
    %c0_0 = arith.constant 0 : index
    %0 = vector.load %arg8[%c0, %c0_0] : memref<1x32xf32, #tpu.memory_space<vmem>>, vector<1x32xf32>
    %c0_1 = arith.constant 0 : index
    %c0_2 = arith.constant 0 : index
    %1 = vector.load %arg9[%c0_1, %c0_2] : memref<1x1xf32, #tpu.memory_space<vmem>>, vector<1x1xf32>
    %c0_3 = arith.constant 0 : index
    %c0_4 = arith.constant 0 : index
    %2 = vector.load %arg1[%c0_3, %c0_4] : memref<16x16xf32, #tpu.memory_space<vmem>>, vector<16x16xf32>
    %c0_5 = arith.constant 0 : index
    %c0_6 = arith.constant 0 : index
    %3 = vector.load %arg2[%c0_5, %c0_6] : memref<16x32xf32, #tpu.memory_space<vmem>>, vector<16x32xf32>
    %c0_7 = arith.constant 0 : index
    %c0_8 = arith.constant 0 : index
    %4 = vector.load %arg3[%c0_7, %c0_8] : memref<1x32xf32, #tpu.memory_space<vmem>>, vector<1x32xf32>
    %cst = arith.constant dense<0.000000e+00> : vector<16x32xf32>
    %5 = tpu.matmul %2, %3, %cst {dimension_numbers = #tpu.dot_dimension_numbers<[1], [0], [0], [1], [0, 0, 1, 1], [], []>} : vector<16x16xf32>, vector<16x32xf32>, vector<16x32xf32> -> vector<16x32xf32>
    %6 = vector.broadcast %4 : vector<1x32xf32> to vector<16x32xf32>
    %7 = arith.addf %5, %6 : vector<16x32xf32>
    %8 = arith.negf %7 : vector<16x32xf32>
    %9 = math.exp %8 : vector<16x32xf32>
    %cst_9 = arith.constant 1.000000e+00 : f32
    %10 = vector.broadcast %cst_9 : f32 to vector<16x32xf32>
    %11 = arith.addf %10, %9 : vector<16x32xf32>
    %12 = arith.divf %10, %11 : vector<16x32xf32>
    %13 = arith.mulf %7, %12 : vector<16x32xf32>
    %c0_10 = arith.constant 0 : index
    %c0_11 = arith.constant 0 : index
    %14 = vector.load %arg4[%c0_10, %c0_11] : memref<32x32xf32, #tpu.memory_space<vmem>>, vector<32x32xf32>
    %c0_12 = arith.constant 0 : index
    %c0_13 = arith.constant 0 : index
    %15 = vector.load %arg5[%c0_12, %c0_13] : memref<1x32xf32, #tpu.memory_space<vmem>>, vector<1x32xf32>
    %cst_14 = arith.constant dense<0.000000e+00> : vector<16x32xf32>
    %16 = tpu.matmul %13, %14, %cst_14 {dimension_numbers = #tpu.dot_dimension_numbers<[1], [0], [0], [1], [0, 0, 1, 1], [], []>} : vector<16x32xf32>, vector<32x32xf32>, vector<16x32xf32> -> vector<16x32xf32>
    %17 = vector.broadcast %15 : vector<1x32xf32> to vector<16x32xf32>
    %18 = arith.addf %16, %17 : vector<16x32xf32>
    %19 = arith.negf %18 : vector<16x32xf32>
    %20 = math.exp %19 : vector<16x32xf32>
    %cst_15 = arith.constant 1.000000e+00 : f32
    %21 = vector.broadcast %cst_15 : f32 to vector<16x32xf32>
    %22 = arith.addf %21, %20 : vector<16x32xf32>
    %23 = arith.divf %21, %22 : vector<16x32xf32>
    %24 = arith.mulf %18, %23 : vector<16x32xf32>
    %c0_16 = arith.constant 0 : index
    %c0_17 = arith.constant 0 : index
    %25 = vector.load %arg6[%c0_16, %c0_17] : memref<32x32xf32, #tpu.memory_space<vmem>>, vector<32x32xf32>
    %c0_18 = arith.constant 0 : index
    %c0_19 = arith.constant 0 : index
    %26 = vector.load %arg7[%c0_18, %c0_19] : memref<1x32xf32, #tpu.memory_space<vmem>>, vector<1x32xf32>
    %cst_20 = arith.constant dense<0.000000e+00> : vector<16x32xf32>
    %27 = tpu.matmul %24, %25, %cst_20 {dimension_numbers = #tpu.dot_dimension_numbers<[1], [0], [0], [1], [0, 0, 1, 1], [], []>} : vector<16x32xf32>, vector<32x32xf32>, vector<16x32xf32> -> vector<16x32xf32>
    %28 = vector.broadcast %26 : vector<1x32xf32> to vector<16x32xf32>
    %29 = arith.addf %27, %28 : vector<16x32xf32>
    %30 = arith.negf %29 : vector<16x32xf32>
    %31 = math.exp %30 : vector<16x32xf32>
    %cst_21 = arith.constant 1.000000e+00 : f32
    %32 = vector.broadcast %cst_21 : f32 to vector<16x32xf32>
    %33 = arith.addf %32, %31 : vector<16x32xf32>
    %34 = arith.divf %32, %33 : vector<16x32xf32>
    %35 = arith.mulf %29, %34 : vector<16x32xf32>
    %cst_22 = arith.constant dense<0.000000e+00> : vector<1x16xf32>
    %36 = tpu.matmul %0, %35, %cst_22 {dimension_numbers = #tpu.dot_dimension_numbers<[1], [1], [0], [0], [0, 0, 1, 0], [], []>} : vector<1x32xf32>, vector<16x32xf32>, vector<1x16xf32> -> vector<1x16xf32>
    %37 = vector.broadcast %1 : vector<1x1xf32> to vector<1x16xf32>
    %38 = arith.addf %36, %37 : vector<1x16xf32>
    %39 = vector.shape_cast %38 : vector<1x16xf32> to vector<1x1x16xf32>
    %c0_23 = arith.constant 0 : index
    %c0_24 = arith.constant 0 : index
    %c0_25 = arith.constant 0 : index
    %40 = vector.load %arg10[%c0_23, %c0_24, %c0_25] : memref<1x1x16xf32, #tpu.memory_space<vmem>>, vector<1x1x16xf32>
    tpu.vector_store %arg10[%c0_23, %c0_24, %c0_25], %39 {strides = array<i32>} : memref<1x1x16xf32, #tpu.memory_space<vmem>>, vector<1x1x16xf32>,
    return
  }
  func.func @transform_0(%arg0: i32) -> (i32, i32) {
    %c0_i32 = arith.constant 0 : i32
    %c0_i32_0 = arith.constant 0 : i32
    return %arg0, %c0_i32 : i32, i32
  }
  func.func @transform_1(%arg0: i32) -> (i32, i32) {
    %c0_i32 = arith.constant 0 : i32
    %c0_i32_0 = arith.constant 0 : i32
    %c0_i32_1 = arith.constant 0 : i32
    return %c0_i32, %c0_i32_0 : i32, i32
  }
  func.func @transform_2(%arg0: i32) -> (i32, i32) {
    %c0_i32 = arith.constant 0 : i32
    %c0_i32_0 = arith.constant 0 : i32
    %c0_i32_1 = arith.constant 0 : i32
    return %c0_i32, %c0_i32_0 : i32, i32
  }
  func.func @transform_3(%arg0: i32) -> (i32, i32) {
    %c0_i32 = arith.constant 0 : i32
    %c0_i32_0 = arith.constant 0 : i32
    %c0_i32_1 = arith.constant 0 : i32
    return %c0_i32, %c0_i32_0 : i32, i32
  }
  func.func @transform_4(%arg0: i32) -> (i32, i32) {
    %c0_i32 = arith.constant 0 : i32
    %c0_i32_0 = arith.constant 0 : i32
    %c0_i32_1 = arith.constant 0 : i32
    return %c0_i32, %c0_i32_0 : i32, i32
  }
  func.func @transform_5(%arg0: i32) -> (i32, i32) {
    %c0_i32 = arith.constant 0 : i32
    %c0_i32_0 = arith.constant 0 : i32
    %c0_i32_1 = arith.constant 0 : i32
    return %c0_i32, %c0_i32_0 : i32, i32
  }
  func.func @transform_6(%arg0: i32) -> (i32, i32) {
    %c0_i32 = arith.constant 0 : i32
    %c0_i32_0 = arith.constant 0 : i32
    %c0_i32_1 = arith.constant 0 : i32
    return %c0_i32, %c0_i32_0 : i32, i32
  }
  func.func @transform_7(%arg0: i32) -> (i32, i32) {
    %c0_i32 = arith.constant 0 : i32
    %c0_i32_0 = arith.constant 0 : i32
    %c0_i32_1 = arith.constant 0 : i32
    return %c0_i32, %c0_i32_0 : i32, i32
  }
  func.func @transform_8(%arg0: i32) -> (i32, i32) {
    %c0_i32 = arith.constant 0 : i32
    %c0_i32_0 = arith.constant 0 : i32
    %c0_i32_1 = arith.constant 0 : i32
    return %c0_i32, %c0_i32_0 : i32, i32
  }
  func.func @transform_9(%arg0: i32) -> (i32, i32, i32) {
    %c0_i32 = arith.constant 0 : i32
    %c0_i32_0 = arith.constant 0 : i32
    %c0_i32_1 = arith.constant 0 : i32
    return %arg0, %c0_i32, %c0_i32_0 : i32, i32, i32
  }
}

</mosaic_0001>

<llo_original>
// kernel: tpu_custom_call.1
$region0: #{tpu_custom_call.1}
  #allocation0 [shape = 'u32[]', space=smem, size = 0x4, offset = 0x4, fixed_abs, tag = 'smem constant byte address 0x4 - core index']
  #allocation1 [shape = 'u32[144,128]{1,0:T(1,128)}', space=vmem, size = 0x12000, scoped, tag = 'internal scratch']
  #allocation2 [shape = 'f32[1,1]{1,0:T(1,128)S(1)}', space=vmem, size = 0x200, scoped, tag = 'scoped memory for tpu_custom_call.1']
  %s0 = inlined_call_operand.hbm [shape: f32[16,16], index: 0, kind: input, shape index: {}]
  %s1 = inlined_call_operand.hbm [shape: f32[16,32], index: 1, kind: input, shape index: {}]
  %s2 = inlined_call_operand.vmem [shape: f32[1,32], index: 2, kind: input, shape index: {}]
  %s3 = inlined_call_operand.hbm [shape: f32[32,32], index: 3, kind: input, shape index: {}]
  %s4 = inlined_call_operand.vmem [shape: f32[1,32], index: 4, kind: input, shape index: {}]
  %s5 = inlined_call_operand.hbm [shape: f32[32,32], index: 5, kind: input, shape index: {}]
  %s6 = inlined_call_operand.vmem [shape: f32[1,32], index: 6, kind: input, shape index: {}]
  %s7 = inlined_call_operand.vmem [shape: f32[1,32], index: 7, kind: input, shape index: {}]
  %s8 = inlined_call_operand.<no memory space> [shape: f32[1,1], index: 8, kind: input, shape index: {}]
  %s9 = inlined_call_operand.hbm [shape: f32[1,1,16], index: 9, kind: output, shape index: {}]
  %s10 = sld [smem:[#allocation0]]
  $region62: #{tpu_custom_call.1} parent=0
    _
  %s12 = ssub.s32 1, %s10
  %s13 = scalar_select 0, %s12, %s10
  %v14 = vstv %s8
  %15 = vst [vmem:[#allocation2] sm:$0x1] %v14
  $region1: #{tpu_custom_call.1} parent=0
    #allocation3 [shape = 'u8[8192]{0}', space=vmem, size = 0x2000, scoped, tag = 'input window, operand 0, single buffered']
    #allocation4 [shape = 's32[1]{0}', space=sflag, size = 0x4, scoped, tag = 'scoped memory for tpu_custom_call.1']
    #allocation5 [shape = 's32[1]{0}', space=sflag, size = 0x4, scoped, tag = 'scoped memory for tpu_custom_call.1']
    #allocation6 [shape = 'u8[8192]{0}', space=vmem, size = 0x2000, scoped, tag = 'input window, operand 1, single buffered']
    #allocation7 [shape = 's32[1]{0}', space=sflag, size = 0x4, scoped, tag = 'scoped memory for tpu_custom_call.1']
    #allocation8 [shape = 'u8[16384]{0}', space=vmem, size = 0x4000, scoped, tag = 'input window, operand 3, single buffered']
    #allocation9 [shape = 'u8[16384]{0}', space=vmem, size = 0x4000, scoped, tag = 'input window, operand 5, single buffered']
    #allocation10 [shape = 's32[1]{0}', space=sflag, size = 0x4, scoped, tag = 'scoped memory for tpu_custom_call.1']
    #allocation11 [shape = 'u8[512]{0}', space=vmem, size = 0x400, scoped, tag = 'output window, operand 0, single buffered']
    %16 = vsyncpa [#allocation4], 0
    %17 = vsyncpa [#allocation7], 0
    %18 = vsyncpa [#allocation10], 0
    %19 = vsyncpa [#allocation5], 0
    // Predicated region
    $region2: #{tpu_custom_call.1} parent=1 // pred_check
      _
    $region3: #{tpu_custom_call.1} parent=1 // pred_check_branch
      %21 = sbr.rel (0) target = $region5
    $region4: #{tpu_custom_call.1} parent=1 // pred_region
      %s23 = ssub.s32 256, 256
      %24 = vsyncadd [#allocation4], %s23
      %s25 = sshll.u32 [#allocation3], 4
      %s26 = int_to_ptr.vmem [resolvable:$true] %s25
      %31 = dma.hbm_to_vmem [thread:$0]  %s0, 256, %s26, [#allocation4], 128, 128, 8
    $region5: #{tpu_custom_call.1} parent=1 // pred_fallthru
      _
    // Predicated region
    $region6: #{tpu_custom_call.1} parent=1 // pred_check
      _
    $region7: #{tpu_custom_call.1} parent=1 // pred_check_branch
      %33 = sbr.rel (0) target = $region9
    $region8: #{tpu_custom_call.1} parent=1 // pred_region
      %s35 = ssub.s32 256, 256
      %36 = vsyncadd [#allocation7], %s35
      %s37 = sshll.u32 [#allocation6], 4
      %s38 = int_to_ptr.vmem [resolvable:$true] %s37
      %43 = dma.hbm_to_vmem [thread:$0]  %s1, 256, %s38, [#allocation7], 128, 128, 8
    $region9: #{tpu_custom_call.1} parent=1 // pred_fallthru
      _
    // Predicated region
    $region10: #{tpu_custom_call.1} parent=1 // pred_check
      _
    $region11: #{tpu_custom_call.1} parent=1 // pred_check_branch
      %45 = sbr.rel (0) target = $region13
    $region12: #{tpu_custom_call.1} parent=1 // pred_region
      _
    $region13: #{tpu_custom_call.1} parent=1 // pred_fallthru
      _
    // Predicated region
    $region14: #{tpu_custom_call.1} parent=1 // pred_check
      _
    $region15: #{tpu_custom_call.1} parent=1 // pred_check_branch
      %47 = sbr.rel (0) target = $region17
    $region16: #{tpu_custom_call.1} parent=1 // pred_region
      %s49 = ssub.s32 512, 512
      %50 = vsyncadd [#allocation7], %s49
      %s51 = sshll.u32 [#allocation8], 4
      %s52 = int_to_ptr.vmem [resolvable:$true] %s51
      %57 = dma.hbm_to_vmem [thread:$0]  %s3, 512, %s52, [#allocation7], 128, 128, 8
    $region17: #{tpu_custom_call.1} parent=1 // pred_fallthru
      _
    // Predicated region
    $region18: #{tpu_custom_call.1} parent=1 // pred_check
      _
    $region19: #{tpu_custom_call.1} parent=1 // pred_check_branch
      %59 = sbr.rel (0) target = $region21
    $region20: #{tpu_custom_call.1} parent=1 // pred_region
      _
    $region21: #{tpu_custom_call.1} parent=1 // pred_fallthru
      _
    // Predicated region
    $region22: #{tpu_custom_call.1} parent=1 // pred_check
      _
    $region23: #{tpu_custom_call.1} parent=1 // pred_check_branch
      %61 = sbr.rel (0) target = $region25
    $region24: #{tpu_custom_call.1} parent=1 // pred_region
      %s63 = ssub.s32 512, 512
      %64 = vsyncadd [#allocation10], %s63
      %s65 = sshll.u32 [#allocation9], 4
      %s66 = int_to_ptr.vmem [resolvable:$true] %s65
      %71 = dma.hbm_to_vmem [thread:$0]  %s5, 512, %s66, [#allocation10], 128, 128, 8
    $region25: #{tpu_custom_call.1} parent=1 // pred_fallthru
      _
    // Predicated region
    $region26: #{tpu_custom_call.1} parent=1 // pred_check
      _
    $region27: #{tpu_custom_call.1} parent=1 // pred_check_branch
      %73 = sbr.rel (0) target = $region29
    $region28: #{tpu_custom_call.1} parent=1 // pred_region
      _
    $region29: #{tpu_custom_call.1} parent=1 // pred_fallthru
      _
    // Predicated region
    $region30: #{tpu_custom_call.1} parent=1 // pred_check
      _
    $region31: #{tpu_custom_call.1} parent=1 // pred_check_branch
      %75 = sbr.rel (0) target = $region33
    $region32: #{tpu_custom_call.1} parent=1 // pred_region
      _
    $region33: #{tpu_custom_call.1} parent=1 // pred_fallthru
      _
    // Predicated region
    $region34: #{tpu_custom_call.1} parent=1 // pred_check
      _
    $region35: #{tpu_custom_call.1} parent=1 // pred_check_branch
      %77 = sbr.rel (0) target = $region37
    $region36: #{tpu_custom_call.1} parent=1 // pred_region
      _
    $region37: #{tpu_custom_call.1} parent=1 // pred_fallthru
      _
    // Predicated region
    $region38: #{tpu_custom_call.1} parent=1 // pred_check
      _
    $region39: #{tpu_custom_call.1} parent=1 // pred_check_branch
      %79 = sbr.rel (0) target = $region41
    $region40: #{tpu_custom_call.1} parent=1 // pred_region
      %80 = dma.done [#allocation4], 256
    $region41: #{tpu_custom_call.1} parent=1 // pred_fallthru
      _
    // Predicated region
    $region42: #{tpu_custom_call.1} parent=1 // pred_check
      _
    $region43: #{tpu_custom_call.1} parent=1 // pred_check_branch
      %82 = sbr.rel (0) target = $region45
    $region44: #{tpu_custom_call.1} parent=1 // pred_region
      %83 = dma.done [#allocation7], 256
    $region45: #{tpu_custom_call.1} parent=1 // pred_fallthru
      _
    // Predicated region
    $region46: #{tpu_custom_call.1} parent=1 // pred_check
      _
    $region47: #{tpu_custom_call.1} parent=1 // pred_check_branch
      %85 = sbr.rel (0) target = $region49
    $region48: #{tpu_custom_call.1} parent=1 // pred_region
      %86 = dma.done [#allocation7], 512
    $region49: #{tpu_custom_call.1} parent=1 // pred_fallthru
      _
    // Predicated region
    $region50: #{tpu_custom_call.1} parent=1 // pred_check
      _
    $region51: #{tpu_custom_call.1} parent=1 // pred_check_branch
      %88 = sbr.rel (0) target = $region53
    $region52: #{tpu_custom_call.1} parent=1 // pred_region
      %89 = dma.done [#allocation10], 512
    $region53: #{tpu_custom_call.1} parent=1 // pred_fallthru
      _
    %v90 = vld [vmem:[%s7] sm:$0x1]
    %v91 = vld [vmem:[#allocation2] sm:$0x1]
    %v92 = vld [vmem:[#allocation3] sm:$0xff]
    %v93 = vld [vmem:[#allocation3 + $0x8] sm:$0xff]
    %v94 = vld [vmem:[#allocation6] sm:$0xff]
    %v95 = vld [vmem:[#allocation6 + $0x8] sm:$0xff]
    %v96 = vld [vmem:[%s2] sm:$0x1]
    %v98 = vlaneseq
    %v99 = vshrl.u32 %v98, 7
    %v100 = vsub.s32 0, %v99
    %v101 = vrot.slane %v96, %v100
    %vm103 = vcmask 130048
    %v105 = vsel %vm103, %v92, 0
    %v108 = vsel %vm103, %v93, 0
    %110 = vmatprep.subr.mxu0 0.0
    %111 = vmatpush1.msra.mxu0 %v94
    %112 = vmatprep.subr.mxu0 0.0
    %113 = vmatpush1.msra.mxu0 %v95
    %114 = vmatprep.subr.mxu0 0.0
    %115 = vmatpush1.msra.mxu0 0.0
    %116 = vmatprep.subr.mxu0 0.0
    %117 = vmatpush1.msra.mxu0 0.0
    %118 = vmatprep.subr.mxu0 0.0
    %119 = vmatpush1.msra.mxu0 0.0
    %120 = vmatprep.subr.mxu0 0.0
    %121 = vmatpush1.msra.mxu0 0.0
    %122 = vmatprep.subr.mxu0 0.0
    %123 = vmatpush1.msra.mxu0 0.0
    %124 = vmatprep.subr.mxu0 0.0
    %125 = vmatpush1.msra.mxu0 0.0
    %126 = vmatprep.subr.mxu0 0.0
    %127 = vmatpush1.msra.mxu0 0.0
    %128 = vmatprep.subr.mxu0 0.0
    %129 = vmatpush1.msra.mxu0 0.0
    %130 = vmatprep.subr.mxu0 0.0
    %131 = vmatpush1.msra.mxu0 0.0
    %132 = vmatprep.subr.mxu0 0.0
    %133 = vmatpush1.msra.mxu0 0.0
    %134 = vmatprep.subr.mxu0 0.0
    %135 = vmatpush1.msra.mxu0 0.0
    %136 = vmatprep.subr.mxu0 0.0
    %137 = vmatpush1.msra.mxu0 0.0
    %138 = vmatprep.subr.mxu0 0.0
    %139 = vmatpush1.msra.mxu0 0.0
    %140 = vmatprep.subr.mxu0 0.0
    %141 = vmatpush1.msra.mxu0 0.0
    %142 = vmatprep.subr.mxu0 0.0
    %143 = vmatpush1.msra.mxu0 0.0
    %144 = vmatprep.subr.mxu0 0.0
    %145 = vmatpush1.msra.mxu0 0.0
    %146 = vmatprep.subr.mxu0 0.0
    %147 = vmatpush1.msra.mxu0 0.0
    %148 = vmatprep.subr.mxu0 0.0
    %149 = vmatpush1.msra.mxu0 0.0
    %150 = vmatprep.subr.mxu0 0.0
    %151 = vmatpush1.msra.mxu0 0.0
    %152 = vmatprep.subr.mxu0 0.0
    %153 = vmatpush1.msra.mxu0 0.0
    %154 = vmatprep.subr.mxu0 0.0
    %155 = vmatpush1.msra.mxu0 0.0
    %156 = vmatprep.subr.mxu0 0.0
    %157 = vmatpush1.msra.mxu0 0.0
    %158 = vmatprep.subr.mxu0 0.0
    %159 = vmatpush1.msra.mxu0 0.0
    %160 = vmatprep.subr.mxu0 0.0
    %161 = vmatpush1.msra.mxu0 0.0
    %162 = vmatprep.subr.mxu0 0.0
    %163 = vmatpush1.msra.mxu0 0.0
    %164 = vmatprep.subr.mxu0 0.0
    %165 = vmatpush1.msra.mxu0 0.0
    %166 = vmatprep.subr.mxu0 0.0
    %167 = vmatpush1.msra.mxu0 0.0
    %168 = vmatprep.subr.mxu0 0.0
    %169 = vmatpush1.msra.mxu0 0.0
    %170 = vmatprep.subr.mxu0 0.0
    %171 = vmatpush1.msra.mxu0 0.0
    %172 = vmatprep.subr.mxu0 0.0
    %173 = vmatpush1.msra.mxu0 0.0
    %174 = vmatprep.mubr.f32.mxu0 0.0
    %175 = vmatmul.mubr.f32.gmra.mrb[0].mxu0 %v105
    %v176 = vpop.f32.mrb[0].mxu0
    %v177 = vadd.f32 %v101, %v176
    %v178 = vpop.f32.mrb[0].mxu0
    %179 = vmatprep.mubr.f32.mxu0 0.0
    %180 = vmatmul.mubr.f32.gmra.mrb[0].mxu0 %v108
    %v181 = vpop.f32.mrb[0].mxu0
    %v182 = vadd.f32 %v101, %v181
    %v183 = vpop.f32.mrb[0].mxu0
    %184 = vdwg.mxu0
    %v185 = vxor.u32 %v177, 2147483648
    %v186 = vxor.u32 %v182, 2147483648
    %v187 = vmul.f32 %v185, 1.442695
    %v188 = vpow.pop %v187
    %v189 = vmul.f32 %v186, 1.442695
    %v190 = vpow.pop %v189
    %v191 = vadd.f32 %v188, 1.0
    %v192 = vadd.f32 %v190, 1.0
    %v193 = vrcp.pop %v191
    %v194 = vmul.f32 1.0, %v193
    %v195 = vrcp.pop %v192
    %v196 = vmul.f32 1.0, %v195
    %v197 = vmul.f32 %v177, %v194
    %v198 = vmul.f32 %v182, %v196
    %v199 = vld [vmem:[#allocation8] sm:$0xff]
    %v200 = vld [vmem:[#allocation8 + $0x8] sm:$0xff]
    %v201 = vld [vmem:[#allocation8 + $0x10] sm:$0xff]
    %v202 = vld [vmem:[#allocation8 + $0x18] sm:$0xff]
    %v203 = vld [vmem:[%s4] sm:$0x1]
    %v205 = vlaneseq
    %v206 = vshrl.u32 %v205, 7
    %v207 = vsub.s32 0, %v206
    %v208 = vrot.slane %v203, %v207
    %vm210 = vcmask 261120
    %v212 = vsel %vm210, %v197, 0
    %v215 = vsel %vm210, %v198, 0
    %217 = vmatprep.subr.mxu0 0.0
    %218 = vmatpush1.msra.mxu0 %v199
    %219 = vmatprep.subr.mxu0 0.0
    %220 = vmatpush1.msra.mxu0 %v200
    %221 = vmatprep.subr.mxu0 0.0
    %222 = vmatpush1.msra.mxu0 %v201
    %223 = vmatprep.subr.mxu0 0.0
    %224 = vmatpush1.msra.mxu0 %v202
    %225 = vmatprep.subr.mxu0 0.0
    %226 = vmatpush1.msra.mxu0 0.0
    %227 = vmatprep.subr.mxu0 0.0
    %228 = vmatpush1.msra.mxu0 0.0
    %229 = vmatprep.subr.mxu0 0.0
    %230 = vmatpush1.msra.mxu0 0.0
    %231 = vmatprep.subr.mxu0 0.0
    %232 = vmatpush1.msra.mxu0 0.0
    %233 = vmatprep.subr.mxu0 0.0
    %234 = vmatpush1.msra.mxu0 0.0
    %235 = vmatprep.subr.mxu0 0.0
    %236 = vmatpush1.msra.mxu0 0.0
    %237 = vmatprep.subr.mxu0 0.0
    %238 = vmatpush1.msra.mxu0 0.0
    %239 = vmatprep.subr.mxu0 0.0
    %240 = vmatpush1.msra.mxu0 0.0
    %241 = vmatprep.subr.mxu0 0.0
    %242 = vmatpush1.msra.mxu0 0.0
    %243 = vmatprep.subr.mxu0 0.0
    %244 = vmatpush1.msra.mxu0 0.0
    %245 = vmatprep.subr.mxu0 0.0
    %246 = vmatpush1.msra.mxu0 0.0
    %247 = vmatprep.subr.mxu0 0.0
    %248 = vmatpush1.msra.mxu0 0.0
    %249 = vmatprep.subr.mxu0 0.0
    %250 = vmatpush1.msra.mxu0 0.0
    %251 = vmatprep.subr.mxu0 0.0
    %252 = vmatpush1.msra.mxu0 0.0
    %253 = vmatprep.subr.mxu0 0.0
    %254 = vmatpush1.msra.mxu0 0.0
    %255 = vmatprep.subr.mxu0 0.0
    %256 = vmatpush1.msra.mxu0 0.0
    %257 = vmatprep.subr.mxu0 0.0
    %258 = vmatpush1.msra.mxu0 0.0
    %259 = vmatprep.subr.mxu0 0.0
    %260 = vmatpush1.msra.mxu0 0.0
    %261 = vmatprep.subr.mxu0 0.0
    %262 = vmatpush1.msra.mxu0 0.0
    %263 = vmatprep.subr.mxu0 0.0
    %264 = vmatpush1.msra.mxu0 0.0
    %265 = vmatprep.subr.mxu0 0.0
    %266 = vmatpush1.msra.mxu0 0.0
    %267 = vmatprep.subr.mxu0 0.0
    %268 = vmatpush1.msra.mxu0 0.0
    %269 = vmatprep.subr.mxu0 0.0
    %270 = vmatpush1.msra.mxu0 0.0
    %271 = vmatprep.subr.mxu0 0.0
    %272 = vmatpush1.msra.mxu0 0.0
    %273 = vmatprep.subr.mxu0 0.0
    %274 = vmatpush1.msra.mxu0 0.0
    %275 = vmatprep.subr.mxu0 0.0
    %276 = vmatpush1.msra.mxu0 0.0
    %277 = vmatprep.subr.mxu0 0.0
    %278 = vmatpush1.msra.mxu0 0.0
    %279 = vmatprep.subr.mxu0 0.0
    %280 = vmatpush1.msra.mxu0 0.0
    %281 = vmatprep.mubr.f32.mxu0 0.0
    %282 = vmatmul.mubr.f32.gmra.mrb[0].mxu0 %v212
    %v283 = vpop.f32.mrb[0].mxu0
    %v284 = vadd.f32 %v208, %v283
    %v285 = vpop.f32.mrb[0].mxu0
    %286 = vmatprep.mubr.f32.mxu0 0.0
    %287 = vmatmul.mubr.f32.gmra.mrb[0].mxu0 %v215
    %v288 = vpop.f32.mrb[0].mxu0
    %v289 = vadd.f32 %v208, %v288
    %v290 = vpop.f32.mrb[0].mxu0
    %291 = vdwg.mxu0
    %v292 = vxor.u32 %v284, 2147483648
    %v293 = vxor.u32 %v289, 2147483648
    %v294 = vmul.f32 %v292, 1.442695
    %v295 = vpow.pop %v294
    %v296 = vmul.f32 %v293, 1.442695
    %v297 = vpow.pop %v296
    %v298 = vadd.f32 %v295, 1.0
    %v299 = vadd.f32 %v297, 1.0
    %v300 = vrcp.pop %v298
    %v301 = vmul.f32 1.0, %v300
    %v302 = vrcp.pop %v299
    %v303 = vmul.f32 1.0, %v302
    %v304 = vmul.f32 %v284, %v301
    %v305 = vmul.f32 %v289, %v303
    %v306 = vld [vmem:[#allocation9] sm:$0xff]
    %v307 = vld [vmem:[#allocation9 + $0x8] sm:$0xff]
    %v308 = vld [vmem:[#allocation9 + $0x10] sm:$0xff]
    %v309 = vld [vmem:[#allocation9 + $0x18] sm:$0xff]
    %v310 = vld [vmem:[%s6] sm:$0x1]
    %v312 = vlaneseq
    %v313 = vshrl.u32 %v312, 7
    %v314 = vsub.s32 0, %v313
    %v315 = vrot.slane %v310, %v314
    %v318 = vsel %vm210, %v304, 0
    %v321 = vsel %vm210, %v305, 0
    %323 = vmatprep.subr.mxu0 0.0
    %324 = vmatpush1.msra.mxu0 %v306
    %325 = vmatprep.subr.mxu0 0.0
    %326 = vmatpush1.msra.mxu0 %v307
    %327 = vmatprep.subr.mxu0 0.0
    %328 = vmatpush1.msra.mxu0 %v308
    %329 = vmatprep.subr.mxu0 0.0
    %330 = vmatpush1.msra.mxu0 %v309
    %331 = vmatprep.subr.mxu0 0.0
    %332 = vmatpush1.msra.mxu0 0.0
    %333 = vmatprep.subr.mxu0 0.0
    %334 = vmatpush1.msra.mxu0 0.0
    %335 = vmatprep.subr.mxu0 0.0
    %336 = vmatpush1.msra.mxu0 0.0
    %337 = vmatprep.subr.mxu0 0.0
    %338 = vmatpush1.msra.mxu0 0.0
    %339 = vmatprep.subr.mxu0 0.0
    %340 = vmatpush1.msra.mxu0 0.0
    %341 = vmatprep.subr.mxu0 0.0
    %342 = vmatpush1.msra.mxu0 0.0
    %343 = vmatprep.subr.mxu0 0.0
    %344 = vmatpush1.msra.mxu0 0.0
    %345 = vmatprep.subr.mxu0 0.0
    %346 = vmatpush1.msra.mxu0 0.0
    %347 = vmatprep.subr.mxu0 0.0
    %348 = vmatpush1.msra.mxu0 0.0
    %349 = vmatprep.subr.mxu0 0.0
    %350 = vmatpush1.msra.mxu0 0.0
    %351 = vmatprep.subr.mxu0 0.0
    %352 = vmatpush1.msra.mxu0 0.0
    %353 = vmatprep.subr.mxu0 0.0
    %354 = vmatpush1.msra.mxu0 0.0
    %355 = vmatprep.subr.mxu0 0.0
    %356 = vmatpush1.msra.mxu0 0.0
    %357 = vmatprep.subr.mxu0 0.0
    %358 = vmatpush1.msra.mxu0 0.0
    %359 = vmatprep.subr.mxu0 0.0
    %360 = vmatpush1.msra.mxu0 0.0
    %361 = vmatprep.subr.mxu0 0.0
    %362 = vmatpush1.msra.mxu0 0.0
    %363 = vmatprep.subr.mxu0 0.0
    %364 = vmatpush1.msra.mxu0 0.0
    %365 = vmatprep.subr.mxu0 0.0
    %366 = vmatpush1.msra.mxu0 0.0
    %367 = vmatprep.subr.mxu0 0.0
    %368 = vmatpush1.msra.mxu0 0.0
    %369 = vmatprep.subr.mxu0 0.0
    %370 = vmatpush1.msra.mxu0 0.0
    %371 = vmatprep.subr.mxu0 0.0
    %372 = vmatpush1.msra.mxu0 0.0
    %373 = vmatprep.subr.mxu0 0.0
    %374 = vmatpush1.msra.mxu0 0.0
    %375 = vmatprep.subr.mxu0 0.0
    %376 = vmatpush1.msra.mxu0 0.0
    %377 = vmatprep.subr.mxu0 0.0
    %378 = vmatpush1.msra.mxu0 0.0
    %379 = vmatprep.subr.mxu0 0.0
    %380 = vmatpush1.msra.mxu0 0.0
    %381 = vmatprep.subr.mxu0 0.0
    %382 = vmatpush1.msra.mxu0 0.0
    %383 = vmatprep.subr.mxu0 0.0
    %384 = vmatpush1.msra.mxu0 0.0
    %385 = vmatprep.subr.mxu0 0.0
    %386 = vmatpush1.msra.mxu0 0.0
    %387 = vmatprep.mubr.f32.mxu0 0.0
    %388 = vmatmul.mubr.f32.gmra.mrb[0].mxu0 %v318
    %v389 = vpop.f32.mrb[0].mxu0
    %v390 = vadd.f32 %v315, %v389
    %v391 = vpop.f32.mrb[0].mxu0
    %392 = vmatprep.mubr.f32.mxu0 0.0
    %393 = vmatmul.mubr.f32.gmra.mrb[0].mxu0 %v321
    %v394 = vpop.f32.mrb[0].mxu0
    %v395 = vadd.f32 %v315, %v394
    %v396 = vpop.f32.mrb[0].mxu0
    %397 = vdwg.mxu0
    %v398 = vxor.u32 %v390, 2147483648
    %v399 = vxor.u32 %v395, 2147483648
    %v400 = vmul.f32 %v398, 1.442695
    %v401 = vpow.pop %v400
    %v402 = vmul.f32 %v399, 1.442695
    %v403 = vpow.pop %v402
    %v404 = vadd.f32 %v401, 1.0
    %v405 = vadd.f32 %v403, 1.0
    %v406 = vrcp.pop %v404
    %v407 = vmul.f32 1.0, %v406
    %v408 = vrcp.pop %v405
    %v409 = vmul.f32 1.0, %v408
    %v410 = vmul.f32 %v390, %v407
    %v411 = vmul.f32 %v395, %v409
    %413 = vset.pattern.permute.xlu0 0
    %414 = vperm.xlu0 %413, %v91
    %v415 = vpop.permute.xlu0 %414
    %v417 = vlaneseq
    %v418 = vshrl.u32 %v417, 7
    %v419 = vsub.s32 0, %v418
    %v420 = vrot.slane %v415, %v419
    %v422 = vsel %vm210, %v90, 0
    %v425 = vsel %vm210, %v410, 0
    %v428 = vsel %vm210, %v411, 0
    %430 = vmatprep.subr.mxu0 0.0
    %431 = vmatpush1.xpose.msra.mxu0 %v425
    %432 = vmatprep.subr.mxu0 0.0
    %433 = vmatpush1.xpose.msra.mxu0 %v428
    %434 = vmatprep.subr.mxu0 0.0
    %435 = vmatpush1.xpose.msra.mxu0 0.0
    %436 = vmatprep.subr.mxu0 0.0
    %437 = vmatpush1.xpose.msra.mxu0 0.0
    %438 = vmatprep.subr.mxu0 0.0
    %439 = vmatpush1.xpose.msra.mxu0 0.0
    %440 = vmatprep.subr.mxu0 0.0
    %441 = vmatpush1.xpose.msra.mxu0 0.0
    %442 = vmatprep.subr.mxu0 0.0
    %443 = vmatpush1.xpose.msra.mxu0 0.0
    %444 = vmatprep.subr.mxu0 0.0
    %445 = vmatpush1.xpose.msra.mxu0 0.0
    %446 = vmatprep.subr.mxu0 0.0
    %447 = vmatpush1.xpose.msra.mxu0 0.0
    %448 = vmatprep.subr.mxu0 0.0
    %449 = vmatpush1.xpose.msra.mxu0 0.0
    %450 = vmatprep.subr.mxu0 0.0
    %451 = vmatpush1.xpose.msra.mxu0 0.0
    %452 = vmatprep.subr.mxu0 0.0
    %453 = vmatpush1.xpose.msra.mxu0 0.0
    %454 = vmatprep.subr.mxu0 0.0
    %455 = vmatpush1.xpose.msra.mxu0 0.0
    %456 = vmatprep.subr.mxu0 0.0
    %457 = vmatpush1.xpose.msra.mxu0 0.0
    %458 = vmatprep.subr.mxu0 0.0
    %459 = vmatpush1.xpose.msra.mxu0 0.0
    %460 = vmatprep.subr.mxu0 0.0
    %461 = vmatpush1.xpose.msra.mxu0 0.0
    %462 = vmatprep.subr.mxu0 0.0
    %463 = vmatpush1.xpose.msra.mxu0 0.0
    %464 = vmatprep.subr.mxu0 0.0
    %465 = vmatpush1.xpose.msra.mxu0 0.0
    %466 = vmatprep.subr.mxu0 0.0
    %467 = vmatpush1.xpose.msra.mxu0 0.0
    %468 = vmatprep.subr.mxu0 0.0
    %469 = vmatpush1.xpose.msra.mxu0 0.0
    %470 = vmatprep.subr.mxu0 0.0
    %471 = vmatpush1.xpose.msra.mxu0 0.0
    %472 = vmatprep.subr.mxu0 0.0
    %473 = vmatpush1.xpose.msra.mxu0 0.0
    %474 = vmatprep.subr.mxu0 0.0
    %475 = vmatpush1.xpose.msra.mxu0 0.0
    %476 = vmatprep.subr.mxu0 0.0
    %477 = vmatpush1.xpose.msra.mxu0 0.0
    %478 = vmatprep.subr.mxu0 0.0
    %479 = vmatpush1.xpose.msra.mxu0 0.0
    %480 = vmatprep.subr.mxu0 0.0
    %481 = vmatpush1.xpose.msra.mxu0 0.0
    %482 = vmatprep.subr.mxu0 0.0
    %483 = vmatpush1.xpose.msra.mxu0 0.0
    %484 = vmatprep.subr.mxu0 0.0
    %485 = vmatpush1.xpose.msra.mxu0 0.0
    %486 = vmatprep.subr.mxu0 0.0
    %487 = vmatpush1.xpose.msra.mxu0 0.0
    %488 = vmatprep.subr.mxu0 0.0
    %489 = vmatpush1.xpose.msra.mxu0 0.0
    %490 = vmatprep.subr.mxu0 0.0
    %491 = vmatpush1.xpose.msra.mxu0 0.0
    %492 = vmatprep.subr.mxu0 0.0
    %493 = vmatpush1.xpose.msra.mxu0 0.0
    %494 = vmatprep.mubr.f32.mxu0 0.0
    %495 = vmatmul.mubr.f32.gmra.mrb[0].mxu0 %v422
    %v496 = vpop.f32.mrb[0].mxu0
    %v497 = vadd.f32 %v420, %v496
    %v498 = vpop.f32.mrb[0].mxu0
    %499 = vdwg.mxu0
    %vm500 = vcmask 122880
    %501 = vst.msk [vmem:[#allocation11] sm:$0x1] %vm500, %v497
    // Predicated region
    $region54: #{tpu_custom_call.1} parent=1 // pred_check
      _
    $region55: #{tpu_custom_call.1} parent=1 // pred_check_branch
      %503 = sbr.rel (0) target = $region57
    $region56: #{tpu_custom_call.1} parent=1 // pred_region
      %s505 = ssub.s32 16, 16
      %506 = vsyncadd [#allocation5], %s505
      %s508 = sshll.u32 [#allocation11], 4
      %s509 = int_to_ptr.vmem [resolvable:$true] %s508
      %511 = dma.vmem_to_hbm [thread:$0]  %s509, 16, %s9, [#allocation5]
    $region57: #{tpu_custom_call.1} parent=1 // pred_fallthru
      _
    // Predicated region
    $region58: #{tpu_custom_call.1} parent=1 // pred_check
      _
    $region59: #{tpu_custom_call.1} parent=1 // pred_check_branch
      %513 = sbr.rel (0) target = $region61
    $region60: #{tpu_custom_call.1} parent=1 // pred_region
      %514 = dma.done [#allocation5], 16
    $region61: #{tpu_custom_call.1} parent=1 // pred_fallthru
      _
    %515 = vsyncpa [#allocation4], 1
    %516 = vsyncpa [#allocation7], 1
    %517 = vsyncpa [#allocation10], 1
    %518 = vsyncpa [#allocation5], 1

// kernel: tpu_custom_call.1
$region0: #{tpu_custom_call.1}
  #allocation0 [shape = 'u32[]', space=smem, size = 0x4, offset = 0x4, fixed_abs, tag = 'smem constant byte address 0x4 - core index']
  #allocation1 [shape = 'u32[144,128]{1,0:T(1,128)}', space=vmem, size = 0x12000, scoped, tag = 'internal scratch']
  #allocation2 [shape = 'f32[1,1]{1,0:T(1,128)S(1)}', space=vmem, size = 0x200, scoped, tag = 'scoped memory for tpu_custom_call.1']
  %s0 = inlined_call_operand.hbm [shape: f32[16,16], index: 0, kind: input, shape index: {}]
  %s1 = inlined_call_operand.hbm [shape: f32[16,32], index: 1, kind: input, shape index: {}]
  %s2 = inlined_call_operand.vmem [shape: f32[1,32], index: 2, kind: input, shape index: {}]
  %s3 = inlined_call_operand.hbm [shape: f32[32,32], index: 3, kind: input, shape index: {}]
  %s4 = inlined_call_operand.vmem [shape: f32[1,32], index: 4, kind: input, shape index: {}]
  %s5 = inlined_call_operand.hbm [shape: f32[32,32], index: 5, kind: input, shape index: {}]
  %s6 = inlined_call_operand.vmem [shape: f32[1,32], index: 6, kind: input, shape index: {}]
  %s7 = inlined_call_operand.vmem [shape: f32[1,32], index: 7, kind: input, shape index: {}]
  %s8 = inlined_call_operand.<no memory space> [shape: f32[1,1], index: 8, kind: input, shape index: {}]
  %s9 = inlined_call_operand.hbm [shape: f32[1,1,16], index: 9, kind: output, shape index: {}]
  %s10 = sld [smem:[#allocation0]]
  $region62: #{tpu_custom_call.1} parent=0
    _
  %s12 = ssub.s32 1, %s10
  %s13 = scalar_select 0, %s12, %s10
  %v14 = vstv %s8
  %15 = vst [vmem:[#allocation2] sm:$0x1] %v14
  $region1: #{tpu_custom_call.1} parent=0
    #allocation3 [shape = 'u8[8192]{0}', space=vmem, size = 0x2000, scoped, tag = 'input window, operand 0, single buffered']
    #allocation4 [shape = 's32[1]{0}', space=sflag, size = 0x4, scoped, tag = 'scoped memory for tpu_custom_call.1']
    #allocation5 [shape = 's32[1]{0}', space=sflag, size = 0x4, scoped, tag = 'scoped memory for tpu_custom_call.1']
    #allocation6 [shape = 'u8[8192]{0}', space=vmem, size = 0x2000, scoped, tag = 'input window, operand 1, single buffered']
    #allocation7 [shape = 's32[1]{0}', space=sflag, size = 0x4, scoped, tag = 'scoped memory for tpu_custom_call.1']
    #allocation8 [shape = 'u8[16384]{0}', space=vmem, size = 0x4000, scoped, tag = 'input window, operand 3, single buffered']
    #allocation9 [shape = 'u8[16384]{0}', space=vmem, size = 0x4000, scoped, tag = 'input window, operand 5, single buffered']
    #allocation10 [shape = 's32[1]{0}', space=sflag, size = 0x4, scoped, tag = 'scoped memory for tpu_custom_call.1']
    #allocation11 [shape = 'u8[512]{0}', space=vmem, size = 0x400, scoped, tag = 'output window, operand 0, single buffered']
    %16 = vsyncpa [#allocation4], 0
    %17 = vsyncpa [#allocation7], 0
    %18 = vsyncpa [#allocation10], 0
    %19 = vsyncpa [#allocation5], 0
    // Predicated region
    $region2: #{tpu_custom_call.1} parent=1 // pred_check
      _
    $region3: #{tpu_custom_call.1} parent=1 // pred_check_branch
      %21 = sbr.rel (0) target = $region5
    $region4: #{tpu_custom_call.1} parent=1 // pred_region
      %s23 = ssub.s32 256, 256
      %24 = vsyncadd [#allocation4], %s23
      %s25 = sshll.u32 [#allocation3], 4
      %s26 = int_to_ptr.vmem [resolvable:$true] %s25
      %31 = dma.hbm_to_vmem [thread:$0]  %s0, 256, %s26, [#allocation4], 128, 128, 8
    $region5: #{tpu_custom_call.1} parent=1 // pred_fallthru
      _
    // Predicated region
    $region6: #{tpu_custom_call.1} parent=1 // pred_check
      _
    $region7: #{tpu_custom_call.1} parent=1 // pred_check_branch
      %33 = sbr.rel (0) target = $region9
    $region8: #{tpu_custom_call.1} parent=1 // pred_region
      %s35 = ssub.s32 256, 256
      %36 = vsyncadd [#allocation7], %s35
      %s37 = sshll.u32 [#allocation6], 4
      %s38 = int_to_ptr.vmem [resolvable:$true] %s37
      %43 = dma.hbm_to_vmem [thread:$0]  %s1, 256, %s38, [#allocation7], 128, 128, 8
    $region9: #{tpu_custom_call.1} parent=1 // pred_fallthru
      _
    // Predicated region
    $region10: #{tpu_custom_call.1} parent=1 // pred_check
      _
    $region11: #{tpu_custom_call.1} parent=1 // pred_check_branch
      %45 = sbr.rel (0) target = $region13
    $region12: #{tpu_custom_call.1} parent=1 // pred_region
      _
    $region13: #{tpu_custom_call.1} parent=1 // pred_fallthru
      _
    // Predicated region
    $region14: #{tpu_custom_call.1} parent=1 // pred_check
      _
    $region15: #{tpu_custom_call.1} parent=1 // pred_check_branch
      %47 = sbr.rel (0) target = $region17
    $region16: #{tpu_custom_call.1} parent=1 // pred_region
      %s49 = ssub.s32 512, 512
      %50 = vsyncadd [#allocation7], %s49
      %s51 = sshll.u32 [#allocation8], 4
      %s52 = int_to_ptr.vmem [resolvable:$true] %s51
      %57 = dma.hbm_to_vmem [thread:$0]  %s3, 512, %s52, [#allocation7], 128, 128, 8
    $region17: #{tpu_custom_call.1} parent=1 // pred_fallthru
      _
    // Predicated region
    $region18: #{tpu_custom_call.1} parent=1 // pred_check
      _
    $region19: #{tpu_custom_call.1} parent=1 // pred_check_branch
      %59 = sbr.rel (0) target = $region21
    $region20: #{tpu_custom_call.1} parent=1 // pred_region
      _
    $region21: #{tpu_custom_call.1} parent=1 // pred_fallthru
      _
    // Predicated region
    $region22: #{tpu_custom_call.1} parent=1 // pred_check
      _
    $region23: #{tpu_custom_call.1} parent=1 // pred_check_branch
      %61 = sbr.rel (0) target = $region25
    $region24: #{tpu_custom_call.1} parent=1 // pred_region
      %s63 = ssub.s32 512, 512
      %64 = vsyncadd [#allocation10], %s63
      %s65 = sshll.u32 [#allocation9], 4
      %s66 = int_to_ptr.vmem [resolvable:$true] %s65
      %71 = dma.hbm_to_vmem [thread:$0]  %s5, 512, %s66, [#allocation10], 128, 128, 8
    $region25: #{tpu_custom_call.1} parent=1 // pred_fallthru
      _
    // Predicated region
    $region26: #{tpu_custom_call.1} parent=1 // pred_check
      _
    $region27: #{tpu_custom_call.1} parent=1 // pred_check_branch
      %73 = sbr.rel (0) target = $region29
    $region28: #{tpu_custom_call.1} parent=1 // pred_region
      _
    $region29: #{tpu_custom_call.1} parent=1 // pred_fallthru
      _
    // Predicated region
    $region30: #{tpu_custom_call.1} parent=1 // pred_check
      _
    $region31: #{tpu_custom_call.1} parent=1 // pred_check_branch
      %75 = sbr.rel (0) target = $region33
    $region32: #{tpu_custom_call.1} parent=1 // pred_region
      _
    $region33: #{tpu_custom_call.1} parent=1 // pred_fallthru
      _
    // Predicated region
    $region34: #{tpu_custom_call.1} parent=1 // pred_check
      _
    $region35: #{tpu_custom_call.1} parent=1 // pred_check_branch
      %77 = sbr.rel (0) target = $region37
    $region36: #{tpu_custom_call.1} parent=1 // pred_region
      _
    $region37: #{tpu_custom_call.1} parent=1 // pred_fallthru
      _
    // Predicated region
    $region38: #{tpu_custom_call.1} parent=1 // pred_check
      _
    $region39: #{tpu_custom_call.1} parent=1 // pred_check_branch
      %79 = sbr.rel (0) target = $region41
    $region40: #{tpu_custom_call.1} parent=1 // pred_region
      %80 = dma.done [#allocation4], 256
    $region41: #{tpu_custom_call.1} parent=1 // pred_fallthru
      _
    // Predicated region
    $region42: #{tpu_custom_call.1} parent=1 // pred_check
      _
    $region43: #{tpu_custom_call.1} parent=1 // pred_check_branch
      %82 = sbr.rel (0) target = $region45
    $region44: #{tpu_custom_call.1} parent=1 // pred_region
      %83 = dma.done [#allocation7], 256
    $region45: #{tpu_custom_call.1} parent=1 // pred_fallthru
      _
    // Predicated region
    $region46: #{tpu_custom_call.1} parent=1 // pred_check
      _
    $region47: #{tpu_custom_call.1} parent=1 // pred_check_branch
      %85 = sbr.rel (0) target = $region49
    $region48: #{tpu_custom_call.1} parent=1 // pred_region
      %86 = dma.done [#allocation7], 512
    $region49: #{tpu_custom_call.1} parent=1 // pred_fallthru
      _
    // Predicated region
    $region50: #{tpu_custom_call.1} parent=1 // pred_check
      _
    $region51: #{tpu_custom_call.1} parent=1 // pred_check_branch
      %88 = sbr.rel (0) target = $region53
    $region52: #{tpu_custom_call.1} parent=1 // pred_region
      %89 = dma.done [#allocation10], 512
    $region53: #{tpu_custom_call.1} parent=1 // pred_fallthru
      _
    %v90 = vld [vmem:[%s7] sm:$0x1]
    %v91 = vld [vmem:[#allocation2] sm:$0x1]
    %v92 = vld [vmem:[#allocation3] sm:$0xff]
    %v93 = vld [vmem:[#allocation3 + $0x8] sm:$0xff]
    %v94 = vld [vmem:[#allocation6] sm:$0xff]
    %v95 = vld [vmem:[#allocation6 + $0x8] sm:$0xff]
    %v96 = vld [vmem:[%s2] sm:$0x1]
    %v98 = vlaneseq
    %v99 = vshrl.u32 %v98, 7
    %v100 = vsub.s32 0, %v99
    %v101 = vrot.slane %v96, %v100
    %vm103 = vcmask 130048
    %v105 = vsel %vm103, %v92, 0
    %v108 = vsel %vm103, %v93, 0
    %110 = vmatprep.subr.mxu0 0.0
    %111 = vmatpush1.msra.mxu0 %v94
    %112 = vmatprep.subr.mxu0 0.0
    %113 = vmatpush1.msra.mxu0 %v95
    %114 = vmatprep.subr.mxu0 0.0
    %115 = vmatpush1.msra.mxu0 0.0
    %116 = vmatprep.subr.mxu0 0.0
    %117 = vmatpush1.msra.mxu0 0.0
    %118 = vmatprep.subr.mxu0 0.0
    %119 = vmatpush1.msra.mxu0 0.0
    %120 = vmatprep.subr.mxu0 0.0
    %121 = vmatpush1.msra.mxu0 0.0
    %122 = vmatprep.subr.mxu0 0.0
    %123 = vmatpush1.msra.mxu0 0.0
    %124 = vmatprep.subr.mxu0 0.0
    %125 = vmatpush1.msra.mxu0 0.0
    %126 = vmatprep.subr.mxu0 0.0
    %127 = vmatpush1.msra.mxu0 0.0
    %128 = vmatprep.subr.mxu0 0.0
    %129 = vmatpush1.msra.mxu0 0.0
    %130 = vmatprep.subr.mxu0 0.0
    %131 = vmatpush1.msra.mxu0 0.0
    %132 = vmatprep.subr.mxu0 0.0
    %133 = vmatpush1.msra.mxu0 0.0
    %134 = vmatprep.subr.mxu0 0.0
    %135 = vmatpush1.msra.mxu0 0.0
    %136 = vmatprep.subr.mxu0 0.0
    %137 = vmatpush1.msra.mxu0 0.0
    %138 = vmatprep.subr.mxu0 0.0
    %139 = vmatpush1.msra.mxu0 0.0
    %140 = vmatprep.subr.mxu0 0.0
    %141 = vmatpush1.msra.mxu0 0.0
    %142 = vmatprep.subr.mxu0 0.0
    %143 = vmatpush1.msra.mxu0 0.0
    %144 = vmatprep.subr.mxu0 0.0
    %145 = vmatpush1.msra.mxu0 0.0
    %146 = vmatprep.subr.mxu0 0.0
    %147 = vmatpush1.msra.mxu0 0.0
    %148 = vmatprep.subr.mxu0 0.0
    %149 = vmatpush1.msra.mxu0 0.0
    %150 = vmatprep.subr.mxu0 0.0
    %151 = vmatpush1.msra.mxu0 0.0
    %152 = vmatprep.subr.mxu0 0.0
    %153 = vmatpush1.msra.mxu0 0.0
    %154 = vmatprep.subr.mxu0 0.0
    %155 = vmatpush1.msra.mxu0 0.0
    %156 = vmatprep.subr.mxu0 0.0
    %157 = vmatpush1.msra.mxu0 0.0
    %158 = vmatprep.subr.mxu0 0.0
    %159 = vmatpush1.msra.mxu0 0.0
    %160 = vmatprep.subr.mxu0 0.0
    %161 = vmatpush1.msra.mxu0 0.0
    %162 = vmatprep.subr.mxu0 0.0
    %163 = vmatpush1.msra.mxu0 0.0
    %164 = vmatprep.subr.mxu0 0.0
    %165 = vmatpush1.msra.mxu0 0.0
    %166 = vmatprep.subr.mxu0 0.0
    %167 = vmatpush1.msra.mxu0 0.0
    %168 = vmatprep.subr.mxu0 0.0
    %169 = vmatpush1.msra.mxu0 0.0
    %170 = vmatprep.subr.mxu0 0.0
    %171 = vmatpush1.msra.mxu0 0.0
    %172 = vmatprep.subr.mxu0 0.0
    %173 = vmatpush1.msra.mxu0 0.0
    %174 = vmatprep.mubr.f32.mxu0 0.0
    %175 = vmatmul.mubr.f32.gmra.mrb[0].mxu0 %v105
    %v176 = vpop.f32.mrb[0].mxu0
    %v177 = vadd.f32 %v101, %v176
    %v178 = vpop.f32.mrb[0].mxu0
    %179 = vmatprep.mubr.f32.mxu0 0.0
    %180 = vmatmul.mubr.f32.gmra.mrb[0].mxu0 %v108
    %v181 = vpop.f32.mrb[0].mxu0
    %v182 = vadd.f32 %v101, %v181
    %v183 = vpop.f32.mrb[0].mxu0
    %184 = vdwg.mxu0
    %v185 = vxor.u32 %v177, 2147483648
    %v186 = vxor.u32 %v182, 2147483648
    %v187 = vmul.f32 %v185, 1.442695
    %v188 = vpow.pop %v187
    %v189 = vmul.f32 %v186, 1.442695
    %v190 = vpow.pop %v189
    %v191 = vadd.f32 %v188, 1.0
    %v192 = vadd.f32 %v190, 1.0
    %v193 = vrcp.pop %v191
    %v194 = vmul.f32 1.0, %v193
    %v195 = vrcp.pop %v192
    %v196 = vmul.f32 1.0, %v195
    %v197 = vmul.f32 %v177, %v194
    %v198 = vmul.f32 %v182, %v196
    %v199 = vld [vmem:[#allocation8] sm:$0xff]
    %v200 = vld [vmem:[#allocation8 + $0x8] sm:$0xff]
    %v201 = vld [vmem:[#allocation8 + $0x10] sm:$0xff]
    %v202 = vld [vmem:[#allocation8 + $0x18] sm:$0xff]
    %v203 = vld [vmem:[%s4] sm:$0x1]
    %v205 = vlaneseq
    %v206 = vshrl.u32 %v205, 7
    %v207 = vsub.s32 0, %v206
    %v208 = vrot.slane %v203, %v207
    %vm210 = vcmask 261120
    %v212 = vsel %vm210, %v197, 0
    %v215 = vsel %vm210, %v198, 0
    %217 = vmatprep.subr.mxu0 0.0
    %218 = vmatpush1.msra.mxu0 %v199
    %219 = vmatprep.subr.mxu0 0.0
    %220 = vmatpush1.msra.mxu0 %v200
    %221 = vmatprep.subr.mxu0 0.0
    %222 = vmatpush1.msra.mxu0 %v201
    %223 = vmatprep.subr.mxu0 0.0
    %224 = vmatpush1.msra.mxu0 %v202
    %225 = vmatprep.subr.mxu0 0.0
    %226 = vmatpush1.msra.mxu0 0.0
    %227 = vmatprep.subr.mxu0 0.0
    %228 = vmatpush1.msra.mxu0 0.0
    %229 = vmatprep.subr.mxu0 0.0
    %230 = vmatpush1.msra.mxu0 0.0
    %231 = vmatprep.subr.mxu0 0.0
    %232 = vmatpush1.msra.mxu0 0.0
    %233 = vmatprep.subr.mxu0 0.0
    %234 = vmatpush1.msra.mxu0 0.0
    %235 = vmatprep.subr.mxu0 0.0
    %236 = vmatpush1.msra.mxu0 0.0
    %237 = vmatprep.subr.mxu0 0.0
    %238 = vmatpush1.msra.mxu0 0.0
    %239 = vmatprep.subr.mxu0 0.0
    %240 = vmatpush1.msra.mxu0 0.0
    %241 = vmatprep.subr.mxu0 0.0
    %242 = vmatpush1.msra.mxu0 0.0
    %243 = vmatprep.subr.mxu0 0.0
    %244 = vmatpush1.msra.mxu0 0.0
    %245 = vmatprep.subr.mxu0 0.0
    %246 = vmatpush1.msra.mxu0 0.0
    %247 = vmatprep.subr.mxu0 0.0
    %248 = vmatpush1.msra.mxu0 0.0
    %249 = vmatprep.subr.mxu0 0.0
    %250 = vmatpush1.msra.mxu0 0.0
    %251 = vmatprep.subr.mxu0 0.0
    %252 = vmatpush1.msra.mxu0 0.0
    %253 = vmatprep.subr.mxu0 0.0
    %254 = vmatpush1.msra.mxu0 0.0
    %255 = vmatprep.subr.mxu0 0.0
    %256 = vmatpush1.msra.mxu0 0.0
    %257 = vmatprep.subr.mxu0 0.0
    %258 = vmatpush1.msra.mxu0 0.0
    %259 = vmatprep.subr.mxu0 0.0
    %260 = vmatpush1.msra.mxu0 0.0
    %261 = vmatprep.subr.mxu0 0.0
    %262 = vmatpush1.msra.mxu0 0.0
    %263 = vmatprep.subr.mxu0 0.0
    %264 = vmatpush1.msra.mxu0 0.0
    %265 = vmatprep.subr.mxu0 0.0
    %266 = vmatpush1.msra.mxu0 0.0
    %267 = vmatprep.subr.mxu0 0.0
    %268 = vmatpush1.msra.mxu0 0.0
    %269 = vmatprep.subr.mxu0 0.0
    %270 = vmatpush1.msra.mxu0 0.0
    %271 = vmatprep.subr.mxu0 0.0
    %272 = vmatpush1.msra.mxu0 0.0
    %273 = vmatprep.subr.mxu0 0.0
    %274 = vmatpush1.msra.mxu0 0.0
    %275 = vmatprep.subr.mxu0 0.0
    %276 = vmatpush1.msra.mxu0 0.0
    %277 = vmatprep.subr.mxu0 0.0
    %278 = vmatpush1.msra.mxu0 0.0
    %279 = vmatprep.subr.mxu0 0.0
    %280 = vmatpush1.msra.mxu0 0.0
    %281 = vmatprep.mubr.f32.mxu0 0.0
    %282 = vmatmul.mubr.f32.gmra.mrb[0].mxu0 %v212
    %v283 = vpop.f32.mrb[0].mxu0
    %v284 = vadd.f32 %v208, %v283
    %v285 = vpop.f32.mrb[0].mxu0
    %286 = vmatprep.mubr.f32.mxu0 0.0
    %287 = vmatmul.mubr.f32.gmra.mrb[0].mxu0 %v215
    %v288 = vpop.f32.mrb[0].mxu0
    %v289 = vadd.f32 %v208, %v288
    %v290 = vpop.f32.mrb[0].mxu0
    %291 = vdwg.mxu0
    %v292 = vxor.u32 %v284, 2147483648
    %v293 = vxor.u32 %v289, 2147483648
    %v294 = vmul.f32 %v292, 1.442695
    %v295 = vpow.pop %v294
    %v296 = vmul.f32 %v293, 1.442695
    %v297 = vpow.pop %v296
    %v298 = vadd.f32 %v295, 1.0
    %v299 = vadd.f32 %v297, 1.0
    %v300 = vrcp.pop %v298
    %v301 = vmul.f32 1.0, %v300
    %v302 = vrcp.pop %v299
    %v303 = vmul.f32 1.0, %v302
    %v304 = vmul.f32 %v284, %v301
    %v305 = vmul.f32 %v289, %v303
    %v306 = vld [vmem:[#allocation9] sm:$0xff]
    %v307 = vld [vmem:[#allocation9 + $0x8] sm:$0xff]
    %v308 = vld [vmem:[#allocation9 + $0x10] sm:$0xff]
    %v309 = vld [vmem:[#allocation9 + $0x18] sm:$0xff]
    %v310 = vld [vmem:[%s6] sm:$0x1]
    %v312 = vlaneseq
    %v313 = vshrl.u32 %v312, 7
    %v314 = vsub.s32 0, %v313
    %v315 = vrot.slane %v310, %v314
    %v318 = vsel %vm210, %v304, 0
    %v321 = vsel %vm210, %v305, 0
    %323 = vmatprep.subr.mxu0 0.0
    %324 = vmatpush1.msra.mxu0 %v306
    %325 = vmatprep.subr.mxu0 0.0
    %326 = vmatpush1.msra.mxu0 %v307
    %327 = vmatprep.subr.mxu0 0.0
    %328 = vmatpush1.msra.mxu0 %v308
    %329 = vmatprep.subr.mxu0 0.0
    %330 = vmatpush1.msra.mxu0 %v309
    %331 = vmatprep.subr.mxu0 0.0
    %332 = vmatpush1.msra.mxu0 0.0
    %333 = vmatprep.subr.mxu0 0.0
    %334 = vmatpush1.msra.mxu0 0.0
    %335 = vmatprep.subr.mxu0 0.0
    %336 = vmatpush1.msra.mxu0 0.0
    %337 = vmatprep.subr.mxu0 0.0
    %338 = vmatpush1.msra.mxu0 0.0
    %339 = vmatprep.subr.mxu0 0.0
    %340 = vmatpush1.msra.mxu0 0.0
    %341 = vmatprep.subr.mxu0 0.0
    %342 = vmatpush1.msra.mxu0 0.0
    %343 = vmatprep.subr.mxu0 0.0
    %344 = vmatpush1.msra.mxu0 0.0
    %345 = vmatprep.subr.mxu0 0.0
    %346 = vmatpush1.msra.mxu0 0.0
    %347 = vmatprep.subr.mxu0 0.0
    %348 = vmatpush1.msra.mxu0 0.0
    %349 = vmatprep.subr.mxu0 0.0
    %350 = vmatpush1.msra.mxu0 0.0
    %351 = vmatprep.subr.mxu0 0.0
    %352 = vmatpush1.msra.mxu0 0.0
    %353 = vmatprep.subr.mxu0 0.0
    %354 = vmatpush1.msra.mxu0 0.0
    %355 = vmatprep.subr.mxu0 0.0
    %356 = vmatpush1.msra.mxu0 0.0
    %357 = vmatprep.subr.mxu0 0.0
    %358 = vmatpush1.msra.mxu0 0.0
    %359 = vmatprep.subr.mxu0 0.0
    %360 = vmatpush1.msra.mxu0 0.0
    %361 = vmatprep.subr.mxu0 0.0
    %362 = vmatpush1.msra.mxu0 0.0
    %363 = vmatprep.subr.mxu0 0.0
    %364 = vmatpush1.msra.mxu0 0.0
    %365 = vmatprep.subr.mxu0 0.0
    %366 = vmatpush1.msra.mxu0 0.0
    %367 = vmatprep.subr.mxu0 0.0
    %368 = vmatpush1.msra.mxu0 0.0
    %369 = vmatprep.subr.mxu0 0.0
    %370 = vmatpush1.msra.mxu0 0.0
    %371 = vmatprep.subr.mxu0 0.0
    %372 = vmatpush1.msra.mxu0 0.0
    %373 = vmatprep.subr.mxu0 0.0
    %374 = vmatpush1.msra.mxu0 0.0
    %375 = vmatprep.subr.mxu0 0.0
    %376 = vmatpush1.msra.mxu0 0.0
    %377 = vmatprep.subr.mxu0 0.0
    %378 = vmatpush1.msra.mxu0 0.0
    %379 = vmatprep.subr.mxu0 0.0
    %380 = vmatpush1.msra.mxu0 0.0
    %381 = vmatprep.subr.mxu0 0.0
    %382 = vmatpush1.msra.mxu0 0.0
    %383 = vmatprep.subr.mxu0 0.0
    %384 = vmatpush1.msra.mxu0 0.0
    %385 = vmatprep.subr.mxu0 0.0
    %386 = vmatpush1.msra.mxu0 0.0
    %387 = vmatprep.mubr.f32.mxu0 0.0
    %388 = vmatmul.mubr.f32.gmra.mrb[0].mxu0 %v318
    %v389 = vpop.f32.mrb[0].mxu0
    %v390 = vadd.f32 %v315, %v389
    %v391 = vpop.f32.mrb[0].mxu0
    %392 = vmatprep.mubr.f32.mxu0 0.0
    %393 = vmatmul.mubr.f32.gmra.mrb[0].mxu0 %v321
    %v394 = vpop.f32.mrb[0].mxu0
    %v395 = vadd.f32 %v315, %v394
    %v396 = vpop.f32.mrb[0].mxu0
    %397 = vdwg.mxu0
    %v398 = vxor.u32 %v390, 2147483648
    %v399 = vxor.u32 %v395, 2147483648
    %v400 = vmul.f32 %v398, 1.442695
    %v401 = vpow.pop %v400
    %v402 = vmul.f32 %v399, 1.442695
    %v403 = vpow.pop %v402
    %v404 = vadd.f32 %v401, 1.0
    %v405 = vadd.f32 %v403, 1.0
    %v406 = vrcp.pop %v404
    %v407 = vmul.f32 1.0, %v406
    %v408 = vrcp.pop %v405
    %v409 = vmul.f32 1.0, %v408
    %v410 = vmul.f32 %v390, %v407
    %v411 = vmul.f32 %v395, %v409
    %413 = vset.pattern.permute.xlu0 0
    %414 = vperm.xlu0 %413, %v91
    %v415 = vpop.permute.xlu0 %414
    %v417 = vlaneseq
    %v418 = vshrl.u32 %v417, 7
    %v419 = vsub.s32 0, %v418
    %v420 = vrot.slane %v415, %v419
    %v422 = vsel %vm210, %v90, 0
    %v425 = vsel %vm210, %v410, 0
    %v428 = vsel %vm210, %v411, 0
    %430 = vmatprep.subr.mxu0 0.0
    %431 = vmatpush1.xpose.msra.mxu0 %v425
    %432 = vmatprep.subr.mxu0 0.0
    %433 = vmatpush1.xpose.msra.mxu0 %v428
    %434 = vmatprep.subr.mxu0 0.0
    %435 = vmatpush1.xpose.msra.mxu0 0.0
    %436 = vmatprep.subr.mxu0 0.0
    %437 = vmatpush1.xpose.msra.mxu0 0.0
    %438 = vmatprep.subr.mxu0 0.0
    %439 = vmatpush1.xpose.msra.mxu0 0.0
    %440 = vmatprep.subr.mxu0 0.0
    %441 = vmatpush1.xpose.msra.mxu0 0.0
    %442 = vmatprep.subr.mxu0 0.0
    %443 = vmatpush1.xpose.msra.mxu0 0.0
    %444 = vmatprep.subr.mxu0 0.0
    %445 = vmatpush1.xpose.msra.mxu0 0.0
    %446 = vmatprep.subr.mxu0 0.0
    %447 = vmatpush1.xpose.msra.mxu0 0.0
    %448 = vmatprep.subr.mxu0 0.0
    %449 = vmatpush1.xpose.msra.mxu0 0.0
    %450 = vmatprep.subr.mxu0 0.0
    %451 = vmatpush1.xpose.msra.mxu0 0.0
    %452 = vmatprep.subr.mxu0 0.0
    %453 = vmatpush1.xpose.msra.mxu0 0.0
    %454 = vmatprep.subr.mxu0 0.0
    %455 = vmatpush1.xpose.msra.mxu0 0.0
    %456 = vmatprep.subr.mxu0 0.0
    %457 = vmatpush1.xpose.msra.mxu0 0.0
    %458 = vmatprep.subr.mxu0 0.0
    %459 = vmatpush1.xpose.msra.mxu0 0.0
    %460 = vmatprep.subr.mxu0 0.0
    %461 = vmatpush1.xpose.msra.mxu0 0.0
    %462 = vmatprep.subr.mxu0 0.0
    %463 = vmatpush1.xpose.msra.mxu0 0.0
    %464 = vmatprep.subr.mxu0 0.0
    %465 = vmatpush1.xpose.msra.mxu0 0.0
    %466 = vmatprep.subr.mxu0 0.0
    %467 = vmatpush1.xpose.msra.mxu0 0.0
    %468 = vmatprep.subr.mxu0 0.0
    %469 = vmatpush1.xpose.msra.mxu0 0.0
    %470 = vmatprep.subr.mxu0 0.0
    %471 = vmatpush1.xpose.msra.mxu0 0.0
    %472 = vmatprep.subr.mxu0 0.0
    %473 = vmatpush1.xpose.msra.mxu0 0.0
    %474 = vmatprep.subr.mxu0 0.0
    %475 = vmatpush1.xpose.msra.mxu0 0.0
    %476 = vmatprep.subr.mxu0 0.0
    %477 = vmatpush1.xpose.msra.mxu0 0.0
    %478 = vmatprep.subr.mxu0 0.0
    %479 = vmatpush1.xpose.msra.mxu0 0.0
    %480 = vmatprep.subr.mxu0 0.0
    %481 = vmatpush1.xpose.msra.mxu0 0.0
    %482 = vmatprep.subr.mxu0 0.0
    %483 = vmatpush1.xpose.msra.mxu0 0.0
    %484 = vmatprep.subr.mxu0 0.0
    %485 = vmatpush1.xpose.msra.mxu0 0.0
    %486 = vmatprep.subr.mxu0 0.0
    %487 = vmatpush1.xpose.msra.mxu0 0.0
    %488 = vmatprep.subr.mxu0 0.0
    %489 = vmatpush1.xpose.msra.mxu0 0.0
    %490 = vmatprep.subr.mxu0 0.0
    %491 = vmatpush1.xpose.msra.mxu0 0.0
    %492 = vmatprep.subr.mxu0 0.0
    %493 = vmatpush1.xpose.msra.mxu0 0.0
    %494 = vmatprep.mubr.f32.mxu0 0.0
    %495 = vmatmul.mubr.f32.gmra.mrb[0].mxu0 %v422
    %v496 = vpop.f32.mrb[0].mxu0
    %v497 = vadd.f32 %v420, %v496
    %v498 = vpop.f32.mrb[0].mxu0
    %499 = vdwg.mxu0
    %vm500 = vcmask 122880
    %501 = vst.msk [vmem:[#allocation11] sm:$0x1] %vm500, %v497
    // Predicated region
    $region54: #{tpu_custom_call.1} parent=1 // pred_check
      _
    $region55: #{tpu_custom_call.1} parent=1 // pred_check_branch
      %503 = sbr.rel (0) target = $region57
    $region56: #{tpu_custom_call.1} parent=1 // pred_region
      %s505 = ssub.s32 16, 16
      %506 = vsyncadd [#allocation5], %s505
      %s508 = sshll.u32 [#allocation11], 4
      %s509 = int_to_ptr.vmem [resolvable:$true] %s508
      %511 = dma.vmem_to_hbm [thread:$0]  %s509, 16, %s9, [#allocation5]
    $region57: #{tpu_custom_call.1} parent=1 // pred_fallthru
      _
    // Predicated region
    $region58: #{tpu_custom_call.1} parent=1 // pred_check
      _
    $region59: #{tpu_custom_call.1} parent=1 // pred_check_branch
      %513 = sbr.rel (0) target = $region61
    $region60: #{tpu_custom_call.1} parent=1 // pred_region
      %514 = dma.done [#allocation5], 16
    $region61: #{tpu_custom_call.1} parent=1 // pred_fallthru
      _
    %515 = vsyncpa [#allocation4], 1
    %516 = vsyncpa [#allocation7], 1
    %517 = vsyncpa [#allocation10], 1
    %518 = vsyncpa [#allocation5], 1

</llo_original>
